<compile_context>
chip_gen: v5e
topology: v5e:2x2
jax: 0.10.0
libtpu: 0.0.40
codegen_flags: <defaults>
</compile_context>

<pallas_src>
import jax
import jax.numpy as jnp
from jax import lax
from jax.experimental import pallas as pl
from jax.experimental.pallas import tpu as pltpu


def _qfunc_kernel(obs_ref, act_ref, w1o_ref, w1a_ref, b1_ref,
                  w2_ref, b2_ref, w3_ref, b3_ref, o_ref):
    # Layer 1: Linear + ReLU.  Inputs arrive in natural (tile_b, feat) layout; we
    # contract over the feature axis (dim 1 of BOTH operands) so the batch lands on
    # the lane axis of the result:  (H1, feat) x (tile_b, feat) -> (H1, tile_b).
    # The concat([obs, act]) is fused by splitting W1 into obs / act column blocks.
    dn = (((1,), (1,)), ((), ()))
    h = lax.dot_general(w1o_ref[...], obs_ref[...], dn,
                        preferred_element_type=jnp.float32)
    h = h + lax.dot_general(w1a_ref[...], act_ref[...], dn,
                            preferred_element_type=jnp.float32)
    h = jnp.maximum(h + b1_ref[...], 0.0)                        # (H1, tile_b)
    # Layer 2: Linear + ReLU.
    h = jnp.dot(w2_ref[...], h, preferred_element_type=jnp.float32)
    h = jnp.maximum(h + b2_ref[...], 0.0)                        # (H2, tile_b)
    # Output layer (out_features = 1, Identity): lane-dense (1, tile_b) row.
    q = jnp.dot(w3_ref[...], h, preferred_element_type=jnp.float32) + b3_ref[...]
    o_ref[...] = q.astype(o_ref.dtype)


def _round_up(x, m):
    return pl.cdiv(x, m) * m


def _estimate_vmem_bytes(tile_b, obs_dim, act_dim, h1, h2, itemsize):
    """Conservative per-step VMEM estimate (double-buffered I/O + resident weights
    + f32 intermediates), used to cap tile_b for v7x's 64 MiB VMEM."""
    feat = obs_dim + act_dim
    inputs = 2 * tile_b * feat * itemsize                      # double-buffered obs/act
    output = 2 * tile_b * 4                                    # double-buffered (1, tile_b)
    weights = 2 * (h1 * feat + h1 + h2 * h1 + h2 + h2 + 1) * itemsize
    interm = (feat + h1 + h2 + 1) * tile_b * 4                 # transposed tiles + activations
    return inputs + output + weights + interm


def mlp_q_function(obs, act, params, tile_b=2048,
                   vmem_budget_bytes=40 * 1024 * 1024, compute_dtype=None):
    """Forward pass of MLPQFunction.

    params = (w1, b1, w2, b2, w3, b3) in PyTorch nn.Linear layout:
      w_i: [out_features, in_features], b_i: [out_features].
    compute_dtype: optionally cast inputs/weights (e.g. jnp.bfloat16) to halve the
      dominant HBM read bytes; accumulation stays f32.  Default keeps f32 exactly.
    """
    w1, b1, w2, b2, w3, b3 = params
    B, obs_dim = obs.shape
    act_dim = act.shape[-1]
    h1, h2 = w1.shape[0], w2.shape[0]

    # Fuse the concat: split W1's columns into the obs part and the act part.
    w1o = w1[:, :obs_dim]                              # (H1, obs_dim)
    w1a = w1[:, obs_dim:]                              # (H1, act_dim)
    b1c = b1.reshape(h1, 1).astype(jnp.float32)
    b2c = b2.reshape(h2, 1).astype(jnp.float32)
    w3r = w3.reshape(1, h2)
    b3c = b3.reshape(1, 1).astype(jnp.float32)

    w2c = w2
    if compute_dtype is not None:
        obs, act = obs.astype(compute_dtype), act.astype(compute_dtype)
        w1o, w1a = w1o.astype(compute_dtype), w1a.astype(compute_dtype)
        w2c, w3r = w2c.astype(compute_dtype), w3r.astype(compute_dtype)
    itemsize = jnp.dtype(obs.dtype).itemsize

    # Pick the largest lane tile (multiple of 128) that fits the VMEM budget.
    tile_b = max(128, min(_round_up(tile_b, 128), _round_up(B, 128)))
    while tile_b > 128 and _estimate_vmem_bytes(
            tile_b, obs_dim, act_dim, h1, h2, itemsize) > vmem_budget_bytes:
        tile_b -= 128

    padded_b = _round_up(B, tile_b)      # output is padded; inputs are NOT (partial blocks)
    num_tiles = padded_b // tile_b

    est = _estimate_vmem_bytes(tile_b, obs_dim, act_dim, h1, h2, itemsize)
    vmem_limit = min(max(2 * est, 32 * 1024 * 1024), 48 * 1024 * 1024)

    # Weights/biases: constant index_map -> DMA'd once, VMEM-resident across tiles.
    resident = lambda a: pl.BlockSpec(a.shape, lambda i: (0, 0))

    q_row = pl.pallas_call(
        _qfunc_kernel,
        out_shape=jax.ShapeDtypeStruct((1, padded_b), jnp.float32),
        grid_spec=pltpu.PrefetchScalarGridSpec(
            num_scalar_prefetch=0,
            grid=(num_tiles,),
            in_specs=[
                # Natural (B, feat) layout: contiguous HBM reads, partial last block.
                pl.BlockSpec((tile_b, obs_dim), lambda i: (i, 0)),
                pl.BlockSpec((tile_b, act_dim), lambda i: (i, 0)),
                resident(w1o), resident(w1a), resident(b1c),
                resident(w2c), resident(b2c),
                resident(w3r), resident(b3c),
            ],
            out_specs=pl.BlockSpec((1, tile_b), lambda i: (0, i)),
        ),
        compiler_params=pltpu.CompilerParams(
            dimension_semantics=("parallel",),      # shards batch tiles across v7x's 2 TCs
            vmem_limit_bytes=vmem_limit),
    )(obs, act, w1o, w1a, b1c, w2c, b2c, w3r, b3c)

    return q_row[0, :B]  # == torch.squeeze(q, -1)


def init_params(key, obs_dim, act_dim, hidden_sizes):
    """Deterministic init mimicking torch.nn.Linear default (U[-1/sqrt(fan_in), +]),
    in PyTorch layout: w [out, in], b [out]."""
    sizes = [obs_dim + act_dim] + list(hidden_sizes) + [1]
    params = []
    for j in range(len(sizes) - 1):
        fan_in, fan_out = sizes[j], sizes[j + 1]
        key, kw, kb = jax.random.split(key, 3)
        bound = 1.0 / jnp.sqrt(jnp.float32(fan_in))
        w = jax.random.uniform(kw, (fan_out, fan_in), jnp.float32, -bound, bound)
        b = jax.random.uniform(kb, (fan_out,), jnp.float32, -bound, bound)
        params += [w, b]
    return tuple(params)


def _reference(obs, act, params):
    w1, b1, w2, b2, w3, b3 = params
    x = jnp.concatenate([obs, act], axis=-1)
    h = jnp.maximum(x @ w1.T + b1, 0.0)
    h = jnp.maximum(h @ w2.T + b2, 0.0)
    return jnp.squeeze(h @ w3.T + b3, -1)


if __name__ == "__main__":
    B, obs_dim, act_dim = 8, 16, 4
    hidden_sizes = (32, 32)

    key = jax.random.PRNGKey(0)
    k_obs, k_act, k_params = jax.random.split(key, 3)
    obs = jax.random.normal(k_obs, (B, obs_dim), jnp.float32)
    act = jax.random.normal(k_act, (B, act_dim), jnp.float32)
    params = init_params(k_params, obs_dim, act_dim, hidden_sizes)

    # Small-batch check (single tile, partial input block).
    q = mlp_q_function(obs, act, params)
    jax.block_until_ready(q)
    assert q.shape == (B,), q.shape
    assert jnp.allclose(q, _reference(obs, act, params), atol=1e-5, rtol=1e-5)

    # Larger, uneven batch: multi-tile grid + partial last input block (no host pad).
    B2 = 5000
    k1, k2 = jax.random.split(jax.random.PRNGKey(1))
    obs2 = jax.random.normal(k1, (B2, obs_dim), jnp.float32)
    act2 = jax.random.normal(k2, (B2, act_dim), jnp.float32)
    q2 = mlp_q_function(obs2, act2, params, tile_b=2048)
    jax.block_until_ready(q2)
    assert q2.shape == (B2,), q2.shape
    assert jnp.allclose(q2, _reference(obs2, act2, params), atol=1e-5, rtol=1e-5)

    print("KERNEL_OK")
</pallas_src>

<mosaic_0001>
module attributes {stable_mosaic.version = 11 : i64} {
  func.func @_qfunc_kernel(%arg0: i32, %arg1: memref<128x16xf32, #tpu.memory_space<vmem>>, %arg2: memref<128x4xf32, #tpu.memory_space<vmem>>, %arg3: memref<32x16xf32, #tpu.memory_space<vmem>>, %arg4: memref<32x4xf32, #tpu.memory_space<vmem>>, %arg5: memref<32x1xf32, #tpu.memory_space<vmem>>, %arg6: memref<32x32xf32, #tpu.memory_space<vmem>>, %arg7: memref<32x1xf32, #tpu.memory_space<vmem>>, %arg8: memref<1x32xf32, #tpu.memory_space<vmem>>, %arg9: memref<1x1xf32, #tpu.memory_space<vmem>>, %arg10: memref<1x128xf32, #tpu.memory_space<vmem>>) attributes {dimension_semantics = [#tpu.dimension_semantics<parallel>], iteration_bounds = array<i64: 1>, scalar_prefetch = 0 : i64, scratch_operands = 0 : i64, tpu.core_type = #tpu.core_type<tc>, window_params = [{transform_indices = @transform_0, window_bounds = array<i64: 128, 16>}, {transform_indices = @transform_1, window_bounds = array<i64: 128, 4>}, {pipeline_mode = #tpu.pipeline_mode<synchronous>, transform_indices = @transform_2, window_bounds = array<i64: 32, 16>}, {pipeline_mode = #tpu.pipeline_mode<synchronous>, transform_indices = @transform_3, window_bounds = array<i64: 32, 4>}, {pipeline_mode = #tpu.pipeline_mode<synchronous>, transform_indices = @transform_4, window_bounds = array<i64: 32, 1>}, {pipeline_mode = #tpu.pipeline_mode<synchronous>, transform_indices = @transform_5, window_bounds = array<i64: 32, 32>}, {pipeline_mode = #tpu.pipeline_mode<synchronous>, transform_indices = @transform_6, window_bounds = array<i64: 32, 1>}, {pipeline_mode = #tpu.pipeline_mode<synchronous>, transform_indices = @transform_7, window_bounds = array<i64: 1, 32>}, {pipeline_mode = #tpu.pipeline_mode<synchronous>, transform_indices = @transform_8, window_bounds = array<i64: 1, 1>}, {transform_indices = @transform_9, window_bounds = array<i64: 1, 128>}]} {
    %c0 = arith.constant 0 : index
    %c0_0 = arith.constant 0 : index
    %0 = vector.load %arg3[%c0, %c0_0] : memref<32x16xf32, #tpu.memory_space<vmem>>, vector<32x16xf32>
    %c0_1 = arith.constant 0 : index
    %c0_2 = arith.constant 0 : index
    %1 = vector.load %arg1[%c0_1, %c0_2] : memref<128x16xf32, #tpu.memory_space<vmem>>, vector<128x16xf32>
    %cst = arith.constant dense<0.000000e+00> : vector<32x128xf32>
    %2 = tpu.matmul %0, %1, %cst {dimension_numbers = #tpu.dot_dimension_numbers<[1], [1], [0], [0], [0, 0, 1, 0], [], []>} : vector<32x16xf32>, vector<128x16xf32>, vector<32x128xf32> -> vector<32x128xf32>
    %c0_3 = arith.constant 0 : index
    %c0_4 = arith.constant 0 : index
    %3 = vector.load %arg4[%c0_3, %c0_4] : memref<32x4xf32, #tpu.memory_space<vmem>>, vector<32x4xf32>
    %c0_5 = arith.constant 0 : index
    %c0_6 = arith.constant 0 : index
    %4 = vector.load %arg2[%c0_5, %c0_6] : memref<128x4xf32, #tpu.memory_space<vmem>>, vector<128x4xf32>
    %cst_7 = arith.constant dense<0.000000e+00> : vector<32x128xf32>
    %5 = tpu.matmul %3, %4, %cst_7 {dimension_numbers = #tpu.dot_dimension_numbers<[1], [1], [0], [0], [0, 0, 1, 0], [], []>} : vector<32x4xf32>, vector<128x4xf32>, vector<32x128xf32> -> vector<32x128xf32>
    %6 = arith.addf %2, %5 : vector<32x128xf32>
    %c0_8 = arith.constant 0 : index
    %c0_9 = arith.constant 0 : index
    %7 = vector.load %arg5[%c0_8, %c0_9] : memref<32x1xf32, #tpu.memory_space<vmem>>, vector<32x1xf32>
    %8 = vector.broadcast %7 : vector<32x1xf32> to vector<32x128xf32>
    %9 = arith.addf %6, %8 : vector<32x128xf32>
    %cst_10 = arith.constant 0.000000e+00 : f32
    %10 = vector.broadcast %cst_10 : f32 to vector<32x128xf32>
    %11 = arith.maximumf %9, %10 : vector<32x128xf32>
    %c0_11 = arith.constant 0 : index
    %c0_12 = arith.constant 0 : index
    %12 = vector.load %arg6[%c0_11, %c0_12] : memref<32x32xf32, #tpu.memory_space<vmem>>, vector<32x32xf32>
    %cst_13 = arith.constant dense<0.000000e+00> : vector<32x128xf32>
    %13 = tpu.matmul %12, %11, %cst_13 {dimension_numbers = #tpu.dot_dimension_numbers<[1], [0], [0], [1], [0, 0, 1, 1], [], []>} : vector<32x32xf32>, vector<32x128xf32>, vector<32x128xf32> -> vector<32x128xf32>
    %c0_14 = arith.constant 0 : index
    %c0_15 = arith.constant 0 : index
    %14 = vector.load %arg7[%c0_14, %c0_15] : memref<32x1xf32, #tpu.memory_space<vmem>>, vector<32x1xf32>
    %15 = vector.broadcast %14 : vector<32x1xf32> to vector<32x128xf32>
    %16 = arith.addf %13, %15 : vector<32x128xf32>
    %cst_16 = arith.constant 0.000000e+00 : f32
    %17 = vector.broadcast %cst_16 : f32 to vector<32x128xf32>
    %18 = arith.maximumf %16, %17 : vector<32x128xf32>
    %c0_17 = arith.constant 0 : index
    %c0_18 = arith.constant 0 : index
    %19 = vector.load %arg8[%c0_17, %c0_18] : memref<1x32xf32, #tpu.memory_space<vmem>>, vector<1x32xf32>
    %cst_19 = arith.constant dense<0.000000e+00> : vector<1x128xf32>
    %20 = tpu.matmul %19, %18, %cst_19 {dimension_numbers = #tpu.dot_dimension_numbers<[1], [0], [0], [1], [0, 0, 1, 1], [], []>} : vector<1x32xf32>, vector<32x128xf32>, vector<1x128xf32> -> vector<1x128xf32>
    %c0_20 = arith.constant 0 : index
    %c0_21 = arith.constant 0 : index
    %21 = vector.load %arg9[%c0_20, %c0_21] : memref<1x1xf32, #tpu.memory_space<vmem>>, vector<1x1xf32>
    %22 = vector.broadcast %21 : vector<1x1xf32> to vector<1x128xf32>
    %23 = arith.addf %20, %22 : vector<1x128xf32>
    %c0_22 = arith.constant 0 : index
    %c0_23 = arith.constant 0 : index
    %24 = vector.load %arg10[%c0_22, %c0_23] : memref<1x128xf32, #tpu.memory_space<vmem>>, vector<1x128xf32>
    tpu.vector_store %arg10[%c0_22, %c0_23], %23 {strides = array<i32>} : memref<1x128xf32, #tpu.memory_space<vmem>>, vector<1x128xf32>,
    return
  }
  func.func @transform_0(%arg0: i32) -> (i32, i32) {
    %c0_i32 = arith.constant 0 : i32
    %c0_i32_0 = arith.constant 0 : i32
    return %arg0, %c0_i32 : i32, i32
  }
  func.func @transform_1(%arg0: i32) -> (i32, i32) {
    %c0_i32 = arith.constant 0 : i32
    %c0_i32_0 = arith.constant 0 : i32
    return %arg0, %c0_i32 : i32, i32
  }
  func.func @transform_2(%arg0: i32) -> (i32, i32) {
    %c0_i32 = arith.constant 0 : i32
    %c0_i32_0 = arith.constant 0 : i32
    %c0_i32_1 = arith.constant 0 : i32
    return %c0_i32, %c0_i32_0 : i32, i32
  }
  func.func @transform_3(%arg0: i32) -> (i32, i32) {
    %c0_i32 = arith.constant 0 : i32
    %c0_i32_0 = arith.constant 0 : i32
    %c0_i32_1 = arith.constant 0 : i32
    return %c0_i32, %c0_i32_0 : i32, i32
  }
  func.func @transform_4(%arg0: i32) -> (i32, i32) {
    %c0_i32 = arith.constant 0 : i32
    %c0_i32_0 = arith.constant 0 : i32
    %c0_i32_1 = arith.constant 0 : i32
    return %c0_i32, %c0_i32_0 : i32, i32
  }
  func.func @transform_5(%arg0: i32) -> (i32, i32) {
    %c0_i32 = arith.constant 0 : i32
    %c0_i32_0 = arith.constant 0 : i32
    %c0_i32_1 = arith.constant 0 : i32
    return %c0_i32, %c0_i32_0 : i32, i32
  }
  func.func @transform_6(%arg0: i32) -> (i32, i32) {
    %c0_i32 = arith.constant 0 : i32
    %c0_i32_0 = arith.constant 0 : i32
    %c0_i32_1 = arith.constant 0 : i32
    return %c0_i32, %c0_i32_0 : i32, i32
  }
  func.func @transform_7(%arg0: i32) -> (i32, i32) {
    %c0_i32 = arith.constant 0 : i32
    %c0_i32_0 = arith.constant 0 : i32
    %c0_i32_1 = arith.constant 0 : i32
    return %c0_i32, %c0_i32_0 : i32, i32
  }
  func.func @transform_8(%arg0: i32) -> (i32, i32) {
    %c0_i32 = arith.constant 0 : i32
    %c0_i32_0 = arith.constant 0 : i32
    %c0_i32_1 = arith.constant 0 : i32
    return %c0_i32, %c0_i32_0 : i32, i32
  }
  func.func @transform_9(%arg0: i32) -> (i32, i32) {
    %c0_i32 = arith.constant 0 : i32
    %c0_i32_0 = arith.constant 0 : i32
    return %c0_i32, %arg0 : i32, i32
  }
}

</mosaic_0001>

<llo_original>
// kernel: tpu_custom_call.1
$region0: #{tpu_custom_call.1}
  #allocation0 [shape = 'u32[]', space=smem, size = 0x4, offset = 0x4, fixed_abs, tag = 'smem constant byte address 0x4 - core index']
  #allocation1 [shape = 'u32[72,128]{1,0:T(1,128)}', space=vmem, size = 0x9000, scoped, tag = 'internal scratch']
  #allocation2 [shape = 'f32[1,1]{1,0:T(1,128)S(1)}', space=vmem, size = 0x200, scoped, tag = 'scoped memory for tpu_custom_call.1']
  %s0 = inlined_call_operand.vmem [shape: f32[8,16], index: 0, kind: input, shape index: {}]
  %s1 = inlined_call_operand.vmem [shape: f32[8,4], index: 1, kind: input, shape index: {}]
  %s2 = inlined_call_operand.vmem [shape: f32[32,16], index: 2, kind: input, shape index: {}]
  %s3 = inlined_call_operand.vmem [shape: f32[32,4], index: 3, kind: input, shape index: {}]
  %s4 = inlined_call_operand.vmem [shape: f32[32,1], index: 4, kind: input, shape index: {}]
  %s5 = inlined_call_operand.vmem [shape: f32[32,32], index: 5, kind: input, shape index: {}]
  %s6 = inlined_call_operand.vmem [shape: f32[32,1], index: 6, kind: input, shape index: {}]
  %s7 = inlined_call_operand.vmem [shape: f32[1,32], index: 7, kind: input, shape index: {}]
  %s8 = inlined_call_operand.<no memory space> [shape: f32[1,1], index: 8, kind: input, shape index: {}]
  %s9 = inlined_call_operand.hbm [shape: f32[1,128], index: 9, kind: output, shape index: {}]
  %s10 = sld [smem:[#allocation0]]
  $region46: #{tpu_custom_call.1} parent=0
    _
  %s12 = ssub.s32 1, %s10
  %s13 = scalar_select 0, %s12, %s10
  %v14 = vstv %s8
  %15 = vst [vmem:[#allocation2] sm:$0x1] %v14
  $region1: #{tpu_custom_call.1} parent=0
    #allocation3 [shape = 'u8[512]{0}', space=vmem, size = 0x400, scoped, tag = 'output window, operand 0, single buffered']
    #allocation4 [shape = 's32[1]{0}', space=sflag, size = 0x4, scoped, tag = 'scoped memory for tpu_custom_call.1']
    %16 = vsyncpa [#allocation4], 0
    // Predicated region
    $region2: #{tpu_custom_call.1} parent=1 // pred_check
      _
    $region3: #{tpu_custom_call.1} parent=1 // pred_check_branch
      %18 = sbr.rel (0) target = $region5
    $region4: #{tpu_custom_call.1} parent=1 // pred_region
      _
    $region5: #{tpu_custom_call.1} parent=1 // pred_fallthru
      _
    // Predicated region
    $region6: #{tpu_custom_call.1} parent=1 // pred_check
      _
    $region7: #{tpu_custom_call.1} parent=1 // pred_check_branch
      %20 = sbr.rel (0) target = $region9
    $region8: #{tpu_custom_call.1} parent=1 // pred_region
      _
    $region9: #{tpu_custom_call.1} parent=1 // pred_fallthru
      _
    // Predicated region
    $region10: #{tpu_custom_call.1} parent=1 // pred_check
      _
    $region11: #{tpu_custom_call.1} parent=1 // pred_check_branch
      %22 = sbr.rel (0) target = $region13
    $region12: #{tpu_custom_call.1} parent=1 // pred_region
      _
    $region13: #{tpu_custom_call.1} parent=1 // pred_fallthru
      _
    // Predicated region
    $region14: #{tpu_custom_call.1} parent=1 // pred_check
      _
    $region15: #{tpu_custom_call.1} parent=1 // pred_check_branch
      %24 = sbr.rel (0) target = $region17
    $region16: #{tpu_custom_call.1} parent=1 // pred_region
      _
    $region17: #{tpu_custom_call.1} parent=1 // pred_fallthru
      _
    // Predicated region
    $region18: #{tpu_custom_call.1} parent=1 // pred_check
      _
    $region19: #{tpu_custom_call.1} parent=1 // pred_check_branch
      %26 = sbr.rel (0) target = $region21
    $region20: #{tpu_custom_call.1} parent=1 // pred_region
      _
    $region21: #{tpu_custom_call.1} parent=1 // pred_fallthru
      _
    // Predicated region
    $region22: #{tpu_custom_call.1} parent=1 // pred_check
      _
    $region23: #{tpu_custom_call.1} parent=1 // pred_check_branch
      %28 = sbr.rel (0) target = $region25
    $region24: #{tpu_custom_call.1} parent=1 // pred_region
      _
    $region25: #{tpu_custom_call.1} parent=1 // pred_fallthru
      _
    // Predicated region
    $region26: #{tpu_custom_call.1} parent=1 // pred_check
      _
    $region27: #{tpu_custom_call.1} parent=1 // pred_check_branch
      %30 = sbr.rel (0) target = $region29
    $region28: #{tpu_custom_call.1} parent=1 // pred_region
      _
    $region29: #{tpu_custom_call.1} parent=1 // pred_fallthru
      _
    // Predicated region
    $region30: #{tpu_custom_call.1} parent=1 // pred_check
      _
    $region31: #{tpu_custom_call.1} parent=1 // pred_check_branch
      %32 = sbr.rel (0) target = $region33
    $region32: #{tpu_custom_call.1} parent=1 // pred_region
      _
    $region33: #{tpu_custom_call.1} parent=1 // pred_fallthru
      _
    // Predicated region
    $region34: #{tpu_custom_call.1} parent=1 // pred_check
      _
    $region35: #{tpu_custom_call.1} parent=1 // pred_check_branch
      %34 = sbr.rel (0) target = $region37
    $region36: #{tpu_custom_call.1} parent=1 // pred_region
      _
    $region37: #{tpu_custom_call.1} parent=1 // pred_fallthru
      _
    %v35 = vld [vmem:[%s2] sm:$0xff]
    %v36 = vld [vmem:[%s2 + $0x8] sm:$0xff]
    %v37 = vld [vmem:[%s2 + $0x10] sm:$0xff]
    %v38 = vld [vmem:[%s2 + $0x18] sm:$0xff]
    %v39 = vld [vmem:[%s0] sm:$0xff]
    %v40 = vld [vmem:[%s0 + $0x8] sm:$0xff]
    %v41 = vld [vmem:[%s0 + $0x10] sm:$0xff]
    %v42 = vld [vmem:[%s0 + $0x18] sm:$0xff]
    %v43 = vld [vmem:[%s0 + $0x20] sm:$0xff]
    %v44 = vld [vmem:[%s0 + $0x28] sm:$0xff]
    %v45 = vld [vmem:[%s0 + $0x30] sm:$0xff]
    %v46 = vld [vmem:[%s0 + $0x38] sm:$0xff]
    %v47 = vld [vmem:[%s0 + $0x40] sm:$0xff]
    %v48 = vld [vmem:[%s0 + $0x48] sm:$0xff]
    %v49 = vld [vmem:[%s0 + $0x50] sm:$0xff]
    %v50 = vld [vmem:[%s0 + $0x58] sm:$0xff]
    %v51 = vld [vmem:[%s0 + $0x60] sm:$0xff]
    %v52 = vld [vmem:[%s0 + $0x68] sm:$0xff]
    %v53 = vld [vmem:[%s0 + $0x70] sm:$0xff]
    %v54 = vld [vmem:[%s0 + $0x78] sm:$0xff]
    %v55 = vld [vmem:[%s3] sm:$0xff]
    %v56 = vld [vmem:[%s3 + $0x8] sm:$0xff]
    %v57 = vld [vmem:[%s3 + $0x10] sm:$0xff]
    %v58 = vld [vmem:[%s3 + $0x18] sm:$0xff]
    %v59 = vld [vmem:[%s1] sm:$0xff]
    %v60 = vld [vmem:[%s1 + $0x8] sm:$0xff]
    %v61 = vld [vmem:[%s1 + $0x10] sm:$0xff]
    %v62 = vld [vmem:[%s1 + $0x18] sm:$0xff]
    %v63 = vld [vmem:[%s1 + $0x20] sm:$0xff]
    %v64 = vld [vmem:[%s1 + $0x28] sm:$0xff]
    %v65 = vld [vmem:[%s1 + $0x30] sm:$0xff]
    %v66 = vld [vmem:[%s1 + $0x38] sm:$0xff]
    %v67 = vld [vmem:[%s1 + $0x40] sm:$0xff]
    %v68 = vld [vmem:[%s1 + $0x48] sm:$0xff]
    %v69 = vld [vmem:[%s1 + $0x50] sm:$0xff]
    %v70 = vld [vmem:[%s1 + $0x58] sm:$0xff]
    %v71 = vld [vmem:[%s1 + $0x60] sm:$0xff]
    %v72 = vld [vmem:[%s1 + $0x68] sm:$0xff]
    %v73 = vld [vmem:[%s1 + $0x70] sm:$0xff]
    %v74 = vld [vmem:[%s1 + $0x78] sm:$0xff]
    %vm75 = vcmask 31744
    %v77 = vsel %vm75, %v55, 0
    %v80 = vsel %vm75, %v56, 0
    %v83 = vsel %vm75, %v57, 0
    %v86 = vsel %vm75, %v58, 0
    %v89 = vsel %vm75, %v59, 0
    %v92 = vsel %vm75, %v60, 0
    %v95 = vsel %vm75, %v61, 0
    %v98 = vsel %vm75, %v62, 0
    %v101 = vsel %vm75, %v63, 0
    %v104 = vsel %vm75, %v64, 0
    %v107 = vsel %vm75, %v65, 0
    %v110 = vsel %vm75, %v66, 0
    %v113 = vsel %vm75, %v67, 0
    %v116 = vsel %vm75, %v68, 0
    %v119 = vsel %vm75, %v69, 0
    %v122 = vsel %vm75, %v70, 0
    %v125 = vsel %vm75, %v71, 0
    %v128 = vsel %vm75, %v72, 0
    %v131 = vsel %vm75, %v73, 0
    %v134 = vsel %vm75, %v74, 0
    %136 = vmatpush.xpose.msra.mxu0 %v134
    %137 = vmatpush.xpose.msra.mxu0 %v131
    %138 = vmatpush.xpose.msra.mxu0 %v128
    %139 = vmatpush.xpose.msra.mxu0 %v125
    %140 = vmatpush.xpose.msra.mxu0 %v122
    %141 = vmatpush.xpose.msra.mxu0 %v119
    %142 = vmatpush.xpose.msra.mxu0 %v116
    %143 = vmatpush.xpose.msra.mxu0 %v113
    %144 = vmatpush.xpose.msra.mxu0 %v110
    %145 = vmatpush.xpose.msra.mxu0 %v107
    %146 = vmatpush.xpose.msra.mxu0 %v104
    %147 = vmatpush.xpose.msra.mxu0 %v101
    %148 = vmatpush.xpose.msra.mxu0 %v98
    %149 = vmatpush.xpose.msra.mxu0 %v95
    %150 = vmatpush.xpose.msra.mxu0 %v92
    %151 = vmatpush.xpose.msra.mxu0 %v89
    %152 = vmatmul.f32.gmra.mxu0 %v77
    %v153 = vpop.f32.mrf.mxu0
    %v154 = vadd.f32 0.0, %v153
    %155 = vmatmul.f32.gmra.mxu0 %v80
    %v156 = vpop.f32.mrf.mxu0
    %v157 = vadd.f32 0.0, %v156
    %158 = vmatmul.f32.gmra.mxu0 %v83
    %v159 = vpop.f32.mrf.mxu0
    %v160 = vadd.f32 0.0, %v159
    %161 = vmatmul.f32.gmra.mxu0 %v86
    %v162 = vpop.f32.mrf.mxu0
    %v163 = vadd.f32 0.0, %v162
    %164 = vdwg.mxu0
    %vm165 = vcmask 130048
    %v167 = vsel %vm165, %v35, 0
    %v170 = vsel %vm165, %v36, 0
    %v173 = vsel %vm165, %v37, 0
    %v176 = vsel %vm165, %v38, 0
    %v179 = vsel %vm165, %v39, 0
    %v182 = vsel %vm165, %v40, 0
    %v185 = vsel %vm165, %v41, 0
    %v188 = vsel %vm165, %v42, 0
    %v191 = vsel %vm165, %v43, 0
    %v194 = vsel %vm165, %v44, 0
    %v197 = vsel %vm165, %v45, 0
    %v200 = vsel %vm165, %v46, 0
    %v203 = vsel %vm165, %v47, 0
    %v206 = vsel %vm165, %v48, 0
    %v209 = vsel %vm165, %v49, 0
    %v212 = vsel %vm165, %v50, 0
    %v215 = vsel %vm165, %v51, 0
    %v218 = vsel %vm165, %v52, 0
    %v221 = vsel %vm165, %v53, 0
    %v224 = vsel %vm165, %v54, 0
    %226 = vmatpush.xpose.msra.mxu0 %v224
    %227 = vmatpush.xpose.msra.mxu0 %v221
    %228 = vmatpush.xpose.msra.mxu0 %v218
    %229 = vmatpush.xpose.msra.mxu0 %v215
    %230 = vmatpush.xpose.msra.mxu0 %v212
    %231 = vmatpush.xpose.msra.mxu0 %v209
    %232 = vmatpush.xpose.msra.mxu0 %v206
    %233 = vmatpush.xpose.msra.mxu0 %v203
    %234 = vmatpush.xpose.msra.mxu0 %v200
    %235 = vmatpush.xpose.msra.mxu0 %v197
    %236 = vmatpush.xpose.msra.mxu0 %v194
    %237 = vmatpush.xpose.msra.mxu0 %v191
    %238 = vmatpush.xpose.msra.mxu0 %v188
    %239 = vmatpush.xpose.msra.mxu0 %v185
    %240 = vmatpush.xpose.msra.mxu0 %v182
    %241 = vmatpush.xpose.msra.mxu0 %v179
    %242 = vmatmul.f32.gmra.mxu0 %v167
    %v243 = vpop.f32.mrf.mxu0
    %v244 = vadd.f32 %v154, %v243
    %245 = vmatmul.f32.gmra.mxu0 %v170
    %v246 = vpop.f32.mrf.mxu0
    %v247 = vadd.f32 %v157, %v246
    %248 = vmatmul.f32.gmra.mxu0 %v173
    %v249 = vpop.f32.mrf.mxu0
    %v250 = vadd.f32 %v160, %v249
    %251 = vmatmul.f32.gmra.mxu0 %v176
    %v252 = vpop.f32.mrf.mxu0
    %v253 = vadd.f32 %v163, %v252
    %254 = vdwg.mxu0
    %v255 = vld [vmem:[%s4] sm:$0xff]
    %v256 = vld [vmem:[%s4 + $0x8] sm:$0xff]
    %v257 = vld [vmem:[%s4 + $0x10] sm:$0xff]
    %v258 = vld [vmem:[%s4 + $0x18] sm:$0xff]
    %260 = vset.pattern.permute.xlu0 0
    %261 = vperm.xlu0 %260, %v255
    %v262 = vpop.permute.xlu0 %261
    %265 = vset.pattern.permute.xlu0 0
    %266 = vperm.xlu0 %265, %v256
    %v267 = vpop.permute.xlu0 %266
    %270 = vset.pattern.permute.xlu0 0
    %271 = vperm.xlu0 %270, %v257
    %v272 = vpop.permute.xlu0 %271
    %275 = vset.pattern.permute.xlu0 0
    %276 = vperm.xlu0 %275, %v258
    %v277 = vpop.permute.xlu0 %276
    %v279 = vadd.f32 %v244, %v262
    %v280 = vadd.f32 %v247, %v267
    %v281 = vadd.f32 %v250, %v272
    %v282 = vadd.f32 %v253, %v277
    %v283 = vmax.f32 %v279, 0.0
    %v284 = vmax.f32 %v280, 0.0
    %v285 = vmax.f32 %v281, 0.0
    %v286 = vmax.f32 %v282, 0.0
    %v287 = vld [vmem:[%s5] sm:$0xff]
    %v288 = vld [vmem:[%s5 + $0x8] sm:$0xff]
    %v289 = vld [vmem:[%s5 + $0x10] sm:$0xff]
    %v290 = vld [vmem:[%s5 + $0x18] sm:$0xff]
    %v291 = vld [vmem:[%s6] sm:$0xff]
    %v292 = vld [vmem:[%s6 + $0x8] sm:$0xff]
    %v293 = vld [vmem:[%s6 + $0x10] sm:$0xff]
    %v294 = vld [vmem:[%s6 + $0x18] sm:$0xff]
    %296 = vset.pattern.permute.xlu0 0
    %297 = vperm.xlu0 %296, %v291
    %v298 = vpop.permute.xlu0 %297
    %301 = vset.pattern.permute.xlu0 0
    %302 = vperm.xlu0 %301, %v292
    %v303 = vpop.permute.xlu0 %302
    %306 = vset.pattern.permute.xlu0 0
    %307 = vperm.xlu0 %306, %v293
    %v308 = vpop.permute.xlu0 %307
    %311 = vset.pattern.permute.xlu0 0
    %312 = vperm.xlu0 %311, %v294
    %v313 = vpop.permute.xlu0 %312
    %vm315 = vcmask 261120
    %v317 = vsel %vm315, %v287, 0
    %v320 = vsel %vm315, %v288, 0
    %v323 = vsel %vm315, %v289, 0
    %v326 = vsel %vm315, %v290, 0
    %328 = vmatpush.msra.mxu0 0.0
    %329 = vmatpush.msra.mxu0 0.0
    %330 = vmatpush.msra.mxu0 0.0
    %331 = vmatpush.msra.mxu0 0.0
    %332 = vmatpush.msra.mxu0 0.0
    %333 = vmatpush.msra.mxu0 0.0
    %334 = vmatpush.msra.mxu0 0.0
    %335 = vmatpush.msra.mxu0 0.0
    %336 = vmatpush.msra.mxu0 0.0
    %337 = vmatpush.msra.mxu0 0.0
    %338 = vmatpush.msra.mxu0 0.0
    %339 = vmatpush.msra.mxu0 0.0
    %340 = vmatpush.msra.mxu0 %v286
    %341 = vmatpush.msra.mxu0 %v285
    %342 = vmatpush.msra.mxu0 %v284
    %343 = vmatpush.msra.mxu0 %v283
    %344 = vmatmul.f32.gmra.mxu0 %v317
    %v345 = vpop.f32.mrf.mxu0
    %v346 = vadd.f32 %v298, %v345
    %347 = vmatmul.f32.gmra.mxu0 %v320
    %v348 = vpop.f32.mrf.mxu0
    %v349 = vadd.f32 %v303, %v348
    %350 = vmatmul.f32.gmra.mxu0 %v323
    %v351 = vpop.f32.mrf.mxu0
    %v352 = vadd.f32 %v308, %v351
    %353 = vmatmul.f32.gmra.mxu0 %v326
    %v354 = vpop.f32.mrf.mxu0
    %v355 = vadd.f32 %v313, %v354
    %356 = vdwg.mxu0
    %v357 = vmax.f32 %v346, 0.0
    %v358 = vmax.f32 %v349, 0.0
    %v359 = vmax.f32 %v352, 0.0
    %v360 = vmax.f32 %v355, 0.0
    %v361 = vld [vmem:[%s7] sm:$0x1]
    %v362 = vld [vmem:[#allocation2] sm:$0x1]
    %364 = vset.pattern.permute.xlu0 0
    %365 = vperm.xlu0 %364, %v362
    %v366 = vpop.permute.xlu0 %365
    %v368 = vperm.slane %v366, 0
    %v370 = vsel %vm315, %v361, 0
    %372 = vmatpush.msra.mxu0 0.0
    %373 = vmatpush.msra.mxu0 0.0
    %374 = vmatpush.msra.mxu0 0.0
    %375 = vmatpush.msra.mxu0 0.0
    %376 = vmatpush.msra.mxu0 0.0
    %377 = vmatpush.msra.mxu0 0.0
    %378 = vmatpush.msra.mxu0 0.0
    %379 = vmatpush.msra.mxu0 0.0
    %380 = vmatpush.msra.mxu0 0.0
    %381 = vmatpush.msra.mxu0 0.0
    %382 = vmatpush.msra.mxu0 0.0
    %383 = vmatpush.msra.mxu0 0.0
    %384 = vmatpush.msra.mxu0 %v360
    %385 = vmatpush.msra.mxu0 %v359
    %386 = vmatpush.msra.mxu0 %v358
    %387 = vmatpush.msra.mxu0 %v357
    %388 = vmatmul.f32.gmra.mxu0 %v370
    %v389 = vpop.f32.mrf.mxu0
    %v390 = vadd.f32 %v368, %v389
    %391 = vdwg.mxu0
    %392 = vst [vmem:[#allocation3] sm:$0x1] %v390
    // Predicated region
    $region38: #{tpu_custom_call.1} parent=1 // pred_check
      _
    $region39: #{tpu_custom_call.1} parent=1 // pred_check_branch
      %394 = sbr.rel (0) target = $region41
    $region40: #{tpu_custom_call.1} parent=1 // pred_region
      %396 = vsyncadd [#allocation4], 0
      %s398 = sshll.u32 [#allocation3], 4
      %s399 = int_to_ptr.vmem [resolvable:$true] %s398
      %s400 = sshll.u32 %s9, 4
      %s401 = int_to_ptr.hbm [resolvable:$true] %s400
      %403 = dma.vmem_to_hbm [thread:$0]  %s399, 16, %s401, [#allocation4]
    $region41: #{tpu_custom_call.1} parent=1 // pred_fallthru
      _
    // Predicated region
    $region42: #{tpu_custom_call.1} parent=1 // pred_check
      _
    $region43: #{tpu_custom_call.1} parent=1 // pred_check_branch
      %405 = sbr.rel (0) target = $region45
    $region44: #{tpu_custom_call.1} parent=1 // pred_region
      %407 = dma.done [#allocation4], 16
    $region45: #{tpu_custom_call.1} parent=1 // pred_fallthru
      _
    %408 = vsyncpa [#allocation4], 1

</llo_original>
